<compile_context>
chip_gen: v5e
topology: v5e:2x2
jax: 0.10.0
libtpu: 0.0.40
codegen_flags: <defaults>
</compile_context>

<pallas_src>
import functools

import jax
import jax.numpy as jnp
from jax.experimental import pallas as pl
from jax.experimental.pallas import tpu as pltpu

EPS = 1e-5          # nn.InstanceNorm1d default
_LANES = 128        # TPU vreg lane width


def _tpu_vmem_capacity_bytes():
    """Physical VMEM per core (falls back to 128 MiB if the query fails)."""
    try:
        info = pltpu.get_tpu_info()
        cap = getattr(info, "vmem_capacity_bytes", None)
        if cap:
            return int(cap)
    except Exception:
        pass
    return 128 * 2 ** 20


def _add_norm_kernel(x1_ref, x2_ref, w_ref, b_ref, o_ref, *, fold, d, n_seq):
    """x1/x2/o: (TB, S_f, D_f) tiles with D_f = fold * d; w/b: (1, 1, D_f) f32.

    When fold > 1, each sublane row packs `fold` consecutive seq positions of
    the same `d` channels side by side along the 128 lanes.  Padded seq
    positions (if any) are zero and contribute nothing to the sums; n_seq is
    the true sequence length.
    """
    xa = x1_ref[...] + x2_ref[...]          # residual add, kept in input dtype
    xf = xa.astype(jnp.float32)

    # One-pass statistics over the seq (sublane) axis, f32 accumulation.
    # NOTE: E[x^2]-mean^2 can lose precision if |mean| >> std; clamped at 0.
    s1 = jnp.sum(xf, axis=1, keepdims=True)        # (TB, 1, D_f)
    s2 = jnp.sum(xf * xf, axis=1, keepdims=True)   # (TB, 1, D_f)

    if fold > 1:
        # Combine the `fold` lane-groups holding partial sums of the same
        # channels; cheap XLU lane rotations, result broadcast to every group.
        t1, t2 = s1, s2
        for f in range(1, fold):
            t1 = t1 + pltpu.roll(s1, shift=f * d, axis=2)
            t2 = t2 + pltpu.roll(s2, shift=f * d, axis=2)
        s1, s2 = t1, t2

    inv_n = 1.0 / n_seq
    mean = s1 * inv_n
    var = jnp.maximum(s2 * inv_n - mean * mean, 0.0)   # biased variance (PyTorch)
    inv_std = jax.lax.rsqrt(var + EPS)

    # Fused normalize + affine: out = x * (w*inv_std) + (b - mean*w*inv_std)
    scale = w_ref[...] * inv_std
    shift = b_ref[...] - mean * scale
    o_ref[...] = (xf * scale + shift).astype(o_ref.dtype)


def add_and_normalize(input1, input2, weight, bias):
    """Pallas equivalent of Add_And_Normalization_Module.forward.

    input1, input2: (B, S, D)  float32 or bfloat16
    weight, bias:   (D,)       InstanceNorm1d affine params
    returns:        (B, S, D)  in input dtype
    """
    B, S, D = input1.shape
    out_dtype = input1.dtype
    itemsize = jnp.dtype(out_dtype).itemsize
    sublane = 8 if itemsize >= 4 else 16

    # ---- generation-aware per-input-block budget (elements)
    vmem_cap = _tpu_vmem_capacity_bytes()
    block_target = 512 * 1024 if vmem_cap <= 64 * 2 ** 20 else 1024 * 1024

    # ---- lane folding: pack seq positions into the 128 lanes whenever D | 128.
    # Zero-pad S so the fold always applies (zero rows don't change the stats,
    # since n_seq stays the true S); padded rows are sliced off the output.
    if D < _LANES and _LANES % D == 0:
        fold = _LANES // D
        pad_to = fold * sublane                    # also sublane-align s_f ...
        S_pad = -(-S // pad_to) * pad_to
        if S_pad != S and (S_pad - S) * 8 > S:     # ... unless waste > 12.5%
            S_pad = -(-S // fold) * fold
    else:
        fold = 1
        S_pad = S
    s_f = S_pad // fold
    d_f = D * fold

    # ---- channel tile (lane-dense: multiple of 128 whenever possible)
    if fold > 1 or d_f <= _LANES or d_f % _LANES != 0:
        # fold>1 => d_f == 128; otherwise full extent (D not a 128 multiple is a
        # rare fallback with masked tail stores).
        # TODO(synk): D not dividing / divisible by 128 keeps partially masked lanes.
        td = d_f
    else:
        divisors = [c for c in range(_LANES, d_f + 1, _LANES) if d_f % c == 0]
        divisors.sort(reverse=True)                # largest first
        td = divisors[-1]
        for c in divisors:
            if s_f * c <= block_target:
                td = c
                break
        if B < 2 and td == d_f and len(divisors) > 1:
            td = divisors[1]                       # give the grid >=2 steps
    n_d = d_f // td

    # ---- batch tile: fill the block budget but keep >= ~4 grid steps so the
    # pipeline overlaps and v7x's second TensorCore has work.
    desired_steps = 4
    min_nb = min(B, max(1, -(-desired_steps // n_d)))
    tb_cap = max(1, B // min_nb)
    tb = 1
    for cand in range(min(B, tb_cap), 0, -1):
        if B % cand == 0 and cand * s_f * td <= block_target:
            tb = cand
            break
    n_b = B // tb

    # ---- VMEM estimate / limit: never below 32 MiB (>= every generation's
    # scoped default), capped at ~75% of physical VMEM.
    block_elems = tb * s_f * td
    est_vmem = 3 * 2 * block_elems * itemsize + 2 * block_elems * 4 + 4 * d_f * 4
    default_scoped = 32 * 2 ** 20
    ceiling = max(default_scoped, min(int(0.75 * vmem_cap), 96 * 2 ** 20))
    vmem_limit = int(min(max(default_scoped, est_vmem * 1.5), ceiling))

    # ---- wrapper-side pad (only if needed) + free reshape into folded layout
    x1, x2 = input1, input2
    if S_pad != S:
        pad = ((0, 0), (0, S_pad - S), (0, 0))
        x1 = jnp.pad(x1, pad)
        x2 = jnp.pad(x2, pad)
    x1 = x1.reshape(B, s_f, d_f)
    x2 = x2.reshape(B, s_f, d_f)
    w = jnp.tile(weight.astype(jnp.float32), fold).reshape(1, 1, d_f)
    b = jnp.tile(bias.astype(jnp.float32), fold).reshape(1, 1, d_f)

    kernel = functools.partial(_add_norm_kernel, fold=fold, d=D, n_seq=S)

    out = pl.pallas_call(
        kernel,
        out_shape=jax.ShapeDtypeStruct((B, s_f, d_f), out_dtype),
        grid=(n_b, n_d),
        in_specs=[
            pl.BlockSpec((tb, s_f, td), lambda i, j: (i, 0, j)),
            pl.BlockSpec((tb, s_f, td), lambda i, j: (i, 0, j)),
            pl.BlockSpec((1, 1, td), lambda i, j: (0, 0, j)),
            pl.BlockSpec((1, 1, td), lambda i, j: (0, 0, j)),
        ],
        out_specs=pl.BlockSpec((tb, s_f, td), lambda i, j: (i, 0, j)),
        compiler_params=pltpu.CompilerParams(
            dimension_semantics=("parallel", "parallel"),
            vmem_limit_bytes=vmem_limit,
        ),
    )(x1, x2, w, b)

    out = out.reshape(B, S_pad, D)
    if S_pad != S:
        out = out[:, :S, :]
    return out


def _reference(input1, input2, weight, bias):
    added = (input1 + input2).astype(jnp.float32)
    mean = jnp.mean(added, axis=1, keepdims=True)
    var = jnp.mean((added - mean) ** 2, axis=1, keepdims=True)
    normed = (added - mean) * jax.lax.rsqrt(var + EPS)
    out = normed * weight[None, None, :].astype(jnp.float32) + \
        bias[None, None, :].astype(jnp.float32)
    return out.astype(input1.dtype)


if __name__ == "__main__":
    key = jax.random.PRNGKey(0)

    def _check(B, S, D, keys, dtype=jnp.float32, atol=1e-4, rtol=1e-4):
        k1, k2, k3, k4 = keys
        x1 = jax.random.normal(k1, (B, S, D)).astype(dtype)
        x2 = jax.random.normal(k2, (B, S, D)).astype(dtype)
        w = (1.0 + 0.1 * jax.random.normal(k3, (D,))).astype(jnp.float32)
        b = (0.1 * jax.random.normal(k4, (D,))).astype(jnp.float32)
        out = jax.block_until_ready(add_and_normalize(x1, x2, w, b))
        ref = _reference(x1, x2, w, b)
        assert out.shape == (B, S, D), (out.shape, (B, S, D))
        assert out.dtype == dtype
        assert jnp.allclose(out.astype(jnp.float32), ref.astype(jnp.float32),
                            atol=atol, rtol=rtol), (B, S, D, dtype)

    keys = jax.random.split(key, 24)
    # module shapes: embedding_dim=64, batch=2, problem(seq)=8 -> lane-folded path
    _check(2, 8, 64, keys[0:4])
    # S not divisible by 128//D -> wrapper zero-pads, still lane-dense
    _check(2, 7, 64, keys[4:8])
    # 128-aligned channel path, no fold
    _check(2, 5, 128, keys[8:12])
    # larger problem: padded + sublane-aligned s_f, multi-step grid
    _check(8, 200, 64, keys[12:16])
    # D > 128 path
    _check(4, 16, 256, keys[16:20])
    # bf16 path (stats in f32, add/store in bf16)
    _check(2, 8, 64, keys[20:24], dtype=jnp.bfloat16, atol=5e-2, rtol=5e-2)

    print("KERNEL_OK")
</pallas_src>

<mosaic_0001>
module attributes {stable_mosaic.version = 11 : i64} {
  func.func @_add_norm_kernel(%arg0: i32, %arg1: i32, %arg2: memref<1x4x128xf32, #tpu.memory_space<vmem>>, %arg3: memref<1x4x128xf32, #tpu.memory_space<vmem>>, %arg4: memref<1x1x128xf32, #tpu.memory_space<vmem>>, %arg5: memref<1x1x128xf32, #tpu.memory_space<vmem>>, %arg6: memref<1x4x128xf32, #tpu.memory_space<vmem>>) attributes {dimension_semantics = [#tpu.dimension_semantics<parallel>, #tpu.dimension_semantics<parallel>], iteration_bounds = array<i64: 2, 1>, scalar_prefetch = 0 : i64, scratch_operands = 0 : i64, tpu.core_type = #tpu.core_type<tc>, window_params = [{transform_indices = @transform_0, window_bounds = array<i64: 1, 4, 128>}, {transform_indices = @transform_1, window_bounds = array<i64: 1, 4, 128>}, {transform_indices = @transform_2, window_bounds = array<i64: 1, 1, 128>}, {transform_indices = @transform_3, window_bounds = array<i64: 1, 1, 128>}, {transform_indices = @transform_4, window_bounds = array<i64: 1, 4, 128>}]} {
    %c0 = arith.constant 0 : index
    %c0_0 = arith.constant 0 : index
    %c0_1 = arith.constant 0 : index
    %0 = vector.load %arg2[%c0, %c0_0, %c0_1] : memref<1x4x128xf32, #tpu.memory_space<vmem>>, vector<1x4x128xf32>
    %c0_2 = arith.constant 0 : index
    %c0_3 = arith.constant 0 : index
    %c0_4 = arith.constant 0 : index
    %1 = vector.load %arg3[%c0_2, %c0_3, %c0_4] : memref<1x4x128xf32, #tpu.memory_space<vmem>>, vector<1x4x128xf32>
    %2 = arith.addf %0, %1 : vector<1x4x128xf32>
    %cst = arith.constant dense<0.000000e+00> : vector<1x128xf32>
    %3 = vector.multi_reduction <add>, %2, %cst [1] : vector<1x4x128xf32> to vector<1x128xf32>
    %4 = vector.shape_cast %3 : vector<1x128xf32> to vector<1x1x128xf32>
    %5 = arith.mulf %2, %2 : vector<1x4x128xf32>
    %cst_5 = arith.constant dense<0.000000e+00> : vector<1x128xf32>
    %6 = vector.multi_reduction <add>, %5, %cst_5 [1] : vector<1x4x128xf32> to vector<1x128xf32>
    %7 = vector.shape_cast %6 : vector<1x128xf32> to vector<1x1x128xf32>
    %c64_i32 = arith.constant 64 : i32
    %8 = tpu.dynamic_rotate %4 by %c64_i32 dim 2 : vector<1x1x128xf32>, i32 -> vector<1x1x128xf32>
    %9 = arith.addf %4, %8 : vector<1x1x128xf32>
    %c64_i32_6 = arith.constant 64 : i32
    %10 = tpu.dynamic_rotate %7 by %c64_i32_6 dim 2 : vector<1x1x128xf32>, i32 -> vector<1x1x128xf32>
    %11 = arith.addf %7, %10 : vector<1x1x128xf32>
    %cst_7 = arith.constant 1.250000e-01 : f32
    %12 = vector.broadcast %cst_7 : f32 to vector<1x1x128xf32>
    %13 = arith.mulf %9, %12 : vector<1x1x128xf32>
    %cst_8 = arith.constant 1.250000e-01 : f32
    %14 = vector.broadcast %cst_8 : f32 to vector<1x1x128xf32>
    %15 = arith.mulf %11, %14 : vector<1x1x128xf32>
    %16 = arith.mulf %13, %13 : vector<1x1x128xf32>
    %17 = arith.subf %15, %16 : vector<1x1x128xf32>
    %cst_9 = arith.constant 0.000000e+00 : f32
    %18 = vector.broadcast %cst_9 : f32 to vector<1x1x128xf32>
    %19 = arith.maximumf %17, %18 : vector<1x1x128xf32>
    %cst_10 = arith.constant 9.99999974E-6 : f32
    %20 = vector.broadcast %cst_10 : f32 to vector<1x1x128xf32>
    %21 = arith.addf %19, %20 : vector<1x1x128xf32>
    %22 = math.rsqrt %21 : vector<1x1x128xf32>
    %c0_11 = arith.constant 0 : index
    %c0_12 = arith.constant 0 : index
    %c0_13 = arith.constant 0 : index
    %23 = vector.load %arg4[%c0_11, %c0_12, %c0_13] : memref<1x1x128xf32, #tpu.memory_space<vmem>>, vector<1x1x128xf32>
    %24 = arith.mulf %23, %22 : vector<1x1x128xf32>
    %c0_14 = arith.constant 0 : index
    %c0_15 = arith.constant 0 : index
    %c0_16 = arith.constant 0 : index
    %25 = vector.load %arg5[%c0_14, %c0_15, %c0_16] : memref<1x1x128xf32, #tpu.memory_space<vmem>>, vector<1x1x128xf32>
    %26 = arith.mulf %13, %24 : vector<1x1x128xf32>
    %27 = arith.subf %25, %26 : vector<1x1x128xf32>
    %28 = vector.broadcast %24 : vector<1x1x128xf32> to vector<1x4x128xf32>
    %29 = arith.mulf %2, %28 : vector<1x4x128xf32>
    %30 = vector.broadcast %27 : vector<1x1x128xf32> to vector<1x4x128xf32>
    %31 = arith.addf %29, %30 : vector<1x4x128xf32>
    %c0_17 = arith.constant 0 : index
    %c0_18 = arith.constant 0 : index
    %c0_19 = arith.constant 0 : index
    %32 = vector.load %arg6[%c0_17, %c0_18, %c0_19] : memref<1x4x128xf32, #tpu.memory_space<vmem>>, vector<1x4x128xf32>
    tpu.vector_store %arg6[%c0_17, %c0_18, %c0_19], %31 {strides = array<i32>} : memref<1x4x128xf32, #tpu.memory_space<vmem>>, vector<1x4x128xf32>,
    return
  }
  func.func @transform_0(%arg0: i32, %arg1: i32) -> (i32, i32, i32) {
    %c0_i32 = arith.constant 0 : i32
    %c0_i32_0 = arith.constant 0 : i32
    return %arg0, %c0_i32, %arg1 : i32, i32, i32
  }
  func.func @transform_1(%arg0: i32, %arg1: i32) -> (i32, i32, i32) {
    %c0_i32 = arith.constant 0 : i32
    %c0_i32_0 = arith.constant 0 : i32
    return %arg0, %c0_i32, %arg1 : i32, i32, i32
  }
  func.func @transform_2(%arg0: i32, %arg1: i32) -> (i32, i32, i32) {
    %c0_i32 = arith.constant 0 : i32
    %c0_i32_0 = arith.constant 0 : i32
    %c0_i32_1 = arith.constant 0 : i32
    return %c0_i32, %c0_i32_0, %arg1 : i32, i32, i32
  }
  func.func @transform_3(%arg0: i32, %arg1: i32) -> (i32, i32, i32) {
    %c0_i32 = arith.constant 0 : i32
    %c0_i32_0 = arith.constant 0 : i32
    %c0_i32_1 = arith.constant 0 : i32
    return %c0_i32, %c0_i32_0, %arg1 : i32, i32, i32
  }
  func.func @transform_4(%arg0: i32, %arg1: i32) -> (i32, i32, i32) {
    %c0_i32 = arith.constant 0 : i32
    %c0_i32_0 = arith.constant 0 : i32
    return %arg0, %c0_i32, %arg1 : i32, i32, i32
  }
}

</mosaic_0001>

<llo_original>
// kernel: tpu_custom_call.1
$region0: #{tpu_custom_call.1}
  #allocation0 [shape = 'u32[]', space=smem, size = 0x4, offset = 0x4, fixed_abs, tag = 'smem constant byte address 0x4 - core index']
  #allocation1 [shape = 'u32[72,128]{1,0:T(1,128)}', space=vmem, size = 0x9000, scoped, tag = 'internal scratch']
  %s0 = inlined_call_operand.hbm [shape: f32[2,4,128], index: 0, kind: input, shape index: {}]
  %s1 = inlined_call_operand.hbm [shape: f32[2,4,128], index: 1, kind: input, shape index: {}]
  %s2 = inlined_call_operand.vmem [shape: f32[1,1,128], index: 2, kind: input, shape index: {}]
  %s3 = inlined_call_operand.vmem [shape: f32[1,1,128], index: 3, kind: input, shape index: {}]
  %s4 = inlined_call_operand.hbm [shape: f32[2,4,128], index: 4, kind: output, shape index: {}]
  %s5 = sld [smem:[#allocation0]]
  $region57: #{tpu_custom_call.1} parent=0
    _
  %s7 = ssub.s32 1, %s5
  %s8 = scalar_select 0, %s7, %s5
  $region1: #{tpu_custom_call.1} parent=0
    #allocation2 [shape = 'u8[4096]{0}', space=vmem, size = 0x1000, scoped, tag = 'input window, operand 0']
    #allocation3 [shape = 's32[2]{0}', space=sflag, size = 0x8, scoped, tag = 'scoped memory for tpu_custom_call.1']
    #allocation4 [shape = 's32[2]{0}', space=sflag, size = 0x8, scoped, tag = 'scoped memory for tpu_custom_call.1']
    #allocation5 [shape = 'u8[4096]{0}', space=vmem, size = 0x1000, scoped, tag = 'input window, operand 1']
    #allocation6 [shape = 's32[2]{0}', space=sflag, size = 0x8, scoped, tag = 'scoped memory for tpu_custom_call.1']
    #allocation7 [shape = 'u8[4096]{0}', space=vmem, size = 0x1000, scoped, tag = 'output window, operand 0']
    %9 = vsyncpa [#allocation3], 0
    %s10 = scalar_lea.sflag [#allocation3], 1
    %11 = vsyncpa %s10, 0
    %12 = vsyncpa [#allocation6], 0
    %s13 = scalar_lea.sflag [#allocation6], 1
    %14 = vsyncpa %s13, 0
    %15 = vsyncpa [#allocation4], 0
    %s16 = scalar_lea.sflag [#allocation4], 1
    %17 = vsyncpa %s16, 0
    loop: start=0, step=1, limit=4
    $region2: #{tpu_custom_call.1} parent=1 // loop_pre_header
      _
    $region3: #{tpu_custom_call.1} parent=1 // loop_header
      %s19 = sphi 0, %s23
      %p20 = scmp.ge.s32.totalorder %s19, 4
      %s26 = sphi 0, %s38
      %s27 = sphi 0, %s34
      %s28 = sphi 0, %s26
      %s29 = sphi 0, %s27
      %s30 = sphi 0, %s28
      %s31 = sphi 0, %s29
      %s43 = sphi 0, %s45
      %s46 = sphi 0, %s43
      %s47 = sphi 0, %s46
      %s63 = sphi 0, %s47
      %s71 = sphi 0, %s73
      %s74 = sphi 0, %s71
      %s75 = sphi 0, %s74
      %s91 = sphi 0, %s75
      %s97 = sphi 0, %s99
      %s100 = sphi 0, %s97
      %s101 = sphi 0, %s100
      %s117 = sphi 0, %s101
      %s123 = sphi 0, %s125
      %s126 = sphi 0, %s123
      %s127 = sphi 0, %s126
      %s143 = sphi 0, %s127
      %s151 = sphi 0, %s153
      %s154 = sphi 0, %s151
      %s155 = sphi 0, %s154
      %s171 = sphi 0, %s155
    $region4: #{tpu_custom_call.1} parent=1 // loop_header_branch
      %22 = sbr.rel (%p20) target = $region8
    $region5: #{tpu_custom_call.1} parent=1 // loop_body
      %s24 = ssub.s32 %s19, 1
      %s25 = ssub.s32 %s19, 2
      %s32 = sadd.s32 1, %s27
      %p33 = scmp.ge.s32.totalorder %s32, 1
      %s34 = scalar_select %p33, 0, %s32
      %s35 = sadd.s32 1, %s26
      %s36 = scalar_select %p33, %s35, %s26
      %p37 = scmp.ge.s32.totalorder %s36, 2
      %s38 = scalar_select %p37, 0, %s36
      %s39 = ssub.s32 %s26, %s38
      %s40 = ssub.s32 %s27, %s34
      %s41 = sor.u32 %s39, %s40
      %p42 = scmp.eq.s32.totalorder %s41, 0
      %s44 = sadd.s32 %s43, 1
      %s45 = scalar_select %p42, %s43, %s44
      %p48 = pneg %p42
      %p49 = scmp.eq.s32.totalorder %s19, 1
      %p50 = por %p48, %p49
      %p51 = scmp.ne.s32.totalorder %s43, %s46
      %p52 = scmp.eq.s32.totalorder %s19, 0
      %p53 = por %p51, %p52
      %p54 = scmp.ne.s32.totalorder %s43, %s46
      %p55 = scmp.eq.s32.totalorder %s24, 1
      %p56 = por %p54, %p55
      %p57 = scmp.ne.s32.totalorder %s46, %s47
      %p58 = scmp.eq.s32.totalorder %s24, 0
      %p59 = por %p57, %p58
      %p60 = scmp.ne.s32.totalorder %s46, %s47
      %p61 = scmp.eq.s32.totalorder %s25, 1
      %p62 = por %p60, %p61
      %p64 = scmp.ne.s32.totalorder %s47, %s63
      %p65 = scmp.eq.s32.totalorder %s25, 0
      %p66 = por %p64, %p65
      %s67 = ssub.s32 %s26, %s38
      %s68 = ssub.s32 %s27, %s34
      %s69 = sor.u32 %s67, %s68
      %p70 = scmp.eq.s32.totalorder %s69, 0
      %s72 = sadd.s32 %s71, 1
      %s73 = scalar_select %p70, %s71, %s72
      %p76 = pneg %p70
      %p77 = scmp.eq.s32.totalorder %s19, 1
      %p78 = por %p76, %p77
      %p79 = scmp.ne.s32.totalorder %s71, %s74
      %p80 = scmp.eq.s32.totalorder %s19, 0
      %p81 = por %p79, %p80
      %p82 = scmp.ne.s32.totalorder %s71, %s74
      %p83 = scmp.eq.s32.totalorder %s24, 1
      %p84 = por %p82, %p83
      %p85 = scmp.ne.s32.totalorder %s74, %s75
      %p86 = scmp.eq.s32.totalorder %s24, 0
      %p87 = por %p85, %p86
      %p88 = scmp.ne.s32.totalorder %s74, %s75
      %p89 = scmp.eq.s32.totalorder %s25, 1
      %p90 = por %p88, %p89
      %p92 = scmp.ne.s32.totalorder %s75, %s91
      %p93 = scmp.eq.s32.totalorder %s25, 0
      %p94 = por %p92, %p93
      %s95 = ssub.s32 %s27, %s34
      %p96 = scmp.eq.s32.totalorder %s95, 0
      %s98 = sadd.s32 %s97, 1
      %s99 = scalar_select %p96, %s97, %s98
      %p102 = pneg %p96
      %p103 = scmp.eq.s32.totalorder %s19, 1
      %p104 = por %p102, %p103
      %p105 = scmp.ne.s32.totalorder %s97, %s100
      %p106 = scmp.eq.s32.totalorder %s19, 0
      %p107 = por %p105, %p106
      %p108 = scmp.ne.s32.totalorder %s97, %s100
      %p109 = scmp.eq.s32.totalorder %s24, 1
      %p110 = por %p108, %p109
      %p111 = scmp.ne.s32.totalorder %s100, %s101
      %p112 = scmp.eq.s32.totalorder %s24, 0
      %p113 = por %p111, %p112
      %p114 = scmp.ne.s32.totalorder %s100, %s101
      %p115 = scmp.eq.s32.totalorder %s25, 1
      %p116 = por %p114, %p115
      %p118 = scmp.ne.s32.totalorder %s101, %s117
      %p119 = scmp.eq.s32.totalorder %s25, 0
      %p120 = por %p118, %p119
      %s121 = ssub.s32 %s27, %s34
      %p122 = scmp.eq.s32.totalorder %s121, 0
      %s124 = sadd.s32 %s123, 1
      %s125 = scalar_select %p122, %s123, %s124
      %p128 = pneg %p122
      %p129 = scmp.eq.s32.totalorder %s19, 1
      %p130 = por %p128, %p129
      %p131 = scmp.ne.s32.totalorder %s123, %s126
      %p132 = scmp.eq.s32.totalorder %s19, 0
      %p133 = por %p131, %p132
      %p134 = scmp.ne.s32.totalorder %s123, %s126
      %p135 = scmp.eq.s32.totalorder %s24, 1
      %p136 = por %p134, %p135
      %p137 = scmp.ne.s32.totalorder %s126, %s127
      %p138 = scmp.eq.s32.totalorder %s24, 0
      %p139 = por %p137, %p138
      %p140 = scmp.ne.s32.totalorder %s126, %s127
      %p141 = scmp.eq.s32.totalorder %s25, 1
      %p142 = por %p140, %p141
      %p144 = scmp.ne.s32.totalorder %s127, %s143
      %p145 = scmp.eq.s32.totalorder %s25, 0
      %p146 = por %p144, %p145
      %s147 = ssub.s32 %s26, %s38
      %s148 = ssub.s32 %s27, %s34
      %s149 = sor.u32 %s147, %s148
      %p150 = scmp.eq.s32.totalorder %s149, 0
      %s152 = sadd.s32 %s151, 1
      %s153 = scalar_select %p150, %s151, %s152
      %p156 = pneg %p150
      %p157 = scmp.eq.s32.totalorder %s19, 1
      %p158 = por %p156, %p157
      %p159 = scmp.ne.s32.totalorder %s151, %s154
      %p160 = scmp.eq.s32.totalorder %s19, 0
      %p161 = por %p159, %p160
      %p162 = scmp.ne.s32.totalorder %s151, %s154
      %p163 = scmp.eq.s32.totalorder %s24, 1
      %p164 = por %p162, %p163
      %p165 = scmp.ne.s32.totalorder %s154, %s155
      %p166 = scmp.eq.s32.totalorder %s24, 0
      %p167 = por %p165, %p166
      %p168 = scmp.ne.s32.totalorder %s154, %s155
      %p169 = scmp.eq.s32.totalorder %s25, 1
      %p170 = por %p168, %p169
      %p172 = scmp.ne.s32.totalorder %s155, %s171
      %p173 = scmp.eq.s32.totalorder %s25, 0
      %p174 = por %p172, %p173
      %p175 = scmp.le.s32.totalorder 1, %s19
      %p176 = scmp.lt.s32.totalorder %s19, 3
      %p177 = pnand %p175, %p176
      %p178 = pneg %p177
      // Predicated region
      $region9: #{tpu_custom_call.1} parent=5 // pred_check
        _
      $region10: #{tpu_custom_call.1} parent=5 // pred_check_branch
        %180 = sbr.rel (%p177) target = $region12
      $region11: #{tpu_custom_call.1} parent=5 // pred_region
        %s181 = ssub.s32 %s19, 1
        // Predicated region
        $region13: #{tpu_custom_call.1} parent=11 // pred_check
          %p182 = pneg %p113
        $region14: #{tpu_custom_call.1} parent=11 // pred_check_branch
          %184 = sbr.rel (%p182) target = $region16
        $region15: #{tpu_custom_call.1} parent=11 // pred_region
          %p185 = scmp.lt.s32.totalorder %s29, 0
          %s186 = scalar_select %p185, %s29, 0
          %s187 = scalar_lea.vmem %s2, %s186
        $region16: #{tpu_custom_call.1} parent=11 // pred_fallthru
          _
        // Predicated region
        $region17: #{tpu_custom_call.1} parent=11 // pred_check
          %p188 = pneg %p139
        $region18: #{tpu_custom_call.1} parent=11 // pred_check_branch
          %190 = sbr.rel (%p188) target = $region20
        $region19: #{tpu_custom_call.1} parent=11 // pred_region
          %p191 = scmp.lt.s32.totalorder %s29, 0
          %s192 = scalar_select %p191, %s29, 0
          %s193 = scalar_lea.vmem %s3, %s192
        $region20: #{tpu_custom_call.1} parent=11 // pred_fallthru
          _
      $region12: #{tpu_custom_call.1} parent=5 // pred_fallthru
        _
      %p194 = scmp.lt.s32.totalorder %s19, 2
      // Predicated region
      $region21: #{tpu_custom_call.1} parent=5 // pred_check
        %p195 = pneg %p194
      $region22: #{tpu_custom_call.1} parent=5 // pred_check_branch
        %197 = sbr.rel (%p195) target = $region24
      $region23: #{tpu_custom_call.1} parent=5 // pred_region
        // Predicated region
        $region25: #{tpu_custom_call.1} parent=23 // pred_check
          %p198 = pneg %p53
        $region26: #{tpu_custom_call.1} parent=23 // pred_check_branch
          %200 = sbr.rel (%p198) target = $region28
        $region27: #{tpu_custom_call.1} parent=23 // pred_region
          %s201 = sand.u32 %s43, 1
          %s202 = scalar_lea.sflag [#allocation3], %s201
          %s203 = sand.u32 %s43, 1
          %s204 = smul.addr %s203, 4
          %s205 = scalar_lea.vmem [#allocation2], %s204
          %207 = vsyncadd %s202, 0
          %s208 = sadd.s32 %s27, %s26
          %s209 = smul.addr %s208, 4
          %s210 = scalar_lea.hbm %s0, %s209
          %s212 = sshll.u32 %s210, 4
          %s213 = int_to_ptr.hbm [resolvable:$true] %s212
          %s214 = sshll.u32 %s205, 4
          %s215 = int_to_ptr.vmem [resolvable:$true] %s214
          %217 = dma.hbm_to_vmem [thread:$0]  %s213, 64, %s215, %s202
        $region28: #{tpu_custom_call.1} parent=23 // pred_fallthru
          _
        // Predicated region
        $region29: #{tpu_custom_call.1} parent=23 // pred_check
          %p218 = pneg %p81
        $region30: #{tpu_custom_call.1} parent=23 // pred_check_branch
          %220 = sbr.rel (%p218) target = $region32
        $region31: #{tpu_custom_call.1} parent=23 // pred_region
          %s221 = sand.u32 %s71, 1
          %s222 = scalar_lea.sflag [#allocation6], %s221
          %s223 = sand.u32 %s71, 1
          %s224 = smul.addr %s223, 4
          %s225 = scalar_lea.vmem [#allocation5], %s224
          %227 = vsyncadd %s222, 0
          %s228 = sadd.s32 %s27, %s26
          %s229 = smul.addr %s228, 4
          %s230 = scalar_lea.hbm %s1, %s229
          %s232 = sshll.u32 %s230, 4
          %s233 = int_to_ptr.hbm [resolvable:$true] %s232
          %s234 = sshll.u32 %s225, 4
          %s235 = int_to_ptr.vmem [resolvable:$true] %s234
          %237 = dma.hbm_to_vmem [thread:$0]  %s233, 64, %s235, %s222
        $region32: #{tpu_custom_call.1} parent=23 // pred_fallthru
          _
      $region24: #{tpu_custom_call.1} parent=5 // pred_fallthru
        _
      %p238 = scmp.le.s32.totalorder 1, %s19
      %p239 = scmp.lt.s32.totalorder %s19, 3
      %p240 = pnand %p238, %p239
      %p241 = pneg %p240
      // Predicated region
      $region33: #{tpu_custom_call.1} parent=5 // pred_check
        _
      $region34: #{tpu_custom_call.1} parent=5 // pred_check_branch
        %243 = sbr.rel (%p240) target = $region36
      $region35: #{tpu_custom_call.1} parent=5 // pred_region
        %s244 = ssub.s32 %s19, 1
        %s245 = sand.u32 %s46, 1
        %s246 = scalar_lea.sflag [#allocation3], %s245
        %s247 = sand.u32 %s46, 1
        %s248 = smul.addr %s247, 4
        %s249 = scalar_lea.vmem [#allocation2], %s248
        // Predicated region
        $region37: #{tpu_custom_call.1} parent=35 // pred_check
          %p250 = pneg %p59
        $region38: #{tpu_custom_call.1} parent=35 // pred_check_branch
          %252 = sbr.rel (%p250) target = $region40
        $region39: #{tpu_custom_call.1} parent=35 // pred_region
          %254 = dma.done %s246, 64
        $region40: #{tpu_custom_call.1} parent=35 // pred_fallthru
          _
        %s255 = sand.u32 %s74, 1
        %s256 = scalar_lea.sflag [#allocation6], %s255
        %s257 = sand.u32 %s74, 1
        %s258 = smul.addr %s257, 4
        %s259 = scalar_lea.vmem [#allocation5], %s258
        // Predicated region
        $region41: #{tpu_custom_call.1} parent=35 // pred_check
          %p260 = pneg %p87
        $region42: #{tpu_custom_call.1} parent=35 // pred_check_branch
          %262 = sbr.rel (%p260) target = $region44
        $region43: #{tpu_custom_call.1} parent=35 // pred_region
          %264 = dma.done %s256, 64
        $region44: #{tpu_custom_call.1} parent=35 // pred_fallthru
          _
        %s265 = sand.u32 %s46, 1
        %s266 = scalar_lea.sflag [#allocation3], %s265
        %s267 = sand.u32 %s46, 1
        %s268 = smul.addr %s267, 4
        %s269 = scalar_lea.vmem [#allocation2], %s268
        %p270 = pneg %p59
        %p271 = pneg %p56
        %s272 = sand.u32 %s74, 1
        %s273 = scalar_lea.sflag [#allocation6], %s272
        %s274 = sand.u32 %s74, 1
        %s275 = smul.addr %s274, 4
        %s276 = scalar_lea.vmem [#allocation5], %s275
        %p277 = pneg %p87
        %p278 = pneg %p84
        %p279 = scmp.lt.s32.totalorder %s29, 0
        %s280 = scalar_select %p279, %s29, 0
        %s281 = scalar_lea.vmem %s2, %s280
        %p282 = pneg %p113
        %p283 = pneg %p110
        %p284 = scmp.lt.s32.totalorder %s29, 0
        %s285 = scalar_select %p284, %s29, 0
        %s286 = scalar_lea.vmem %s3, %s285
        %p287 = pneg %p139
        %p288 = pneg %p136
        %p289 = pneg %p167
        %p290 = pneg %p164
        %s291 = sand.u32 %s154, 1
        %s292 = scalar_lea.sflag [#allocation4], %s291
        %s293 = sand.u32 %s154, 1
        %s294 = smul.addr %s293, 4
        %s295 = scalar_lea.vmem [#allocation7], %s294
        %p296 = scmp.lt.s32.totalorder %s29, 0
        %s297 = scalar_select %p296, %s29, 0
        %s298 = scalar_lea.vmem %s2, %s297
        %p299 = scmp.lt.s32.totalorder %s29, 0
        %s300 = scalar_select %p299, %s29, 0
        %s301 = scalar_lea.vmem %s3, %s300
        %v302 = vld [vmem:[%s249] sm:$0xf]
        %v303 = vld [vmem:[%s259] sm:$0xf]
        %v304 = vadd.f32 %v302, %v303
        %vm305 = vcmask 1043456
        %v306 = vsel %vm305, %v304, 0.0
        %v307 = vrot.slane %v306, 4
        %v308 = vadd.f32 %v306, %v307
        %v309 = vrot.slane %v308, 2
        %v310 = vadd.f32 %v308, %v309
        %v311 = vrot.slane %v310, 1
        %v312 = vadd.f32 %v310, %v311
        %v313 = vmul.f32 %v304, %v304
        %v314 = vsel %vm305, %v313, 0.0
        %v315 = vrot.slane %v314, 4
        %v316 = vadd.f32 %v314, %v315
        %v317 = vrot.slane %v316, 2
        %v318 = vadd.f32 %v316, %v317
        %v319 = vrot.slane %v318, 1
        %v320 = vadd.f32 %v318, %v319
        %321 = vrot.lane.b32.xlu0 %v312, 64
        %v322 = vpop.permute.xlu0 %321
        %v323 = vadd.f32 %v312, %v322
        %324 = vrot.lane.b32.xlu0 %v320, 64
        %v325 = vpop.permute.xlu0 %324
        %v326 = vadd.f32 %v320, %v325
        %v327 = vmul.f32 %v323, 0.125
        %v328 = vmul.f32 %v326, 0.125
        %v329 = vmul.f32 %v327, %v327
        %v330 = vsub.f32 %v328, %v329
        %v331 = vmax.f32 %v330, 0.0
        %v332 = vadd.f32 %v331, 1e-05
        %v333 = vrsqrt.pop %v332
        %v334 = vmul.f32 %v333, %v332
        %v335 = vmul.f32 %v334, %v333
        %v336 = vmul.f32 0.5, %v335
        %v337 = vsub.f32 1.5, %v336
        %v338 = vmul.f32 %v333, %v337
        %vm339 = vweird.f32 %v332
        %vm340 = vweird.f32 %v333
        %vm341 = vmor %vm339, %vm340
        %v342 = vsel %vm341, %v333, %v338
        %v343 = vld [vmem:[%s298] sm:$0x1]
        %v344 = vmul.f32 %v343, %v342
        %v345 = vld [vmem:[%s301] sm:$0x1]
        %v346 = vmul.f32 %v327, %v344
        %v347 = vsub.f32 %v345, %v346
        %v349 = vperm.slane %v344, 0
        %v351 = vmul.f32 %v304, %v349
        %v353 = vperm.slane %v347, 0
        %v355 = vadd.f32 %v351, %v353
        %356 = vst [vmem:[%s295] sm:$0xf] %v355
        %s357 = sand.u32 %s154, 1
        %s358 = scalar_lea.sflag [#allocation4], %s357
        %s359 = sand.u32 %s154, 1
        %s360 = smul.addr %s359, 4
        %s361 = scalar_lea.vmem [#allocation7], %s360
        // Predicated region
        $region45: #{tpu_custom_call.1} parent=35 // pred_check
          %p362 = pneg %p164
        $region46: #{tpu_custom_call.1} parent=35 // pred_check_branch
          %364 = sbr.rel (%p362) target = $region48
        $region47: #{tpu_custom_call.1} parent=35 // pred_region
          %366 = vsyncadd %s358, 0
          %s367 = sadd.s32 %s29, %s28
          %s368 = smul.addr %s367, 4
          %s369 = scalar_lea.hbm %s4, %s368
          %s371 = sshll.u32 %s361, 4
          %s372 = int_to_ptr.vmem [resolvable:$true] %s371
          %s373 = sshll.u32 %s369, 4
          %s374 = int_to_ptr.hbm [resolvable:$true] %s373
          %376 = dma.vmem_to_hbm [thread:$0]  %s372, 64, %s374, %s358
        $region48: #{tpu_custom_call.1} parent=35 // pred_fallthru
          _
      $region36: #{tpu_custom_call.1} parent=5 // pred_fallthru
        _
      %p377 = scmp.le.s32.totalorder 2, %s19
      // Predicated region
      $region49: #{tpu_custom_call.1} parent=5 // pred_check
        %p378 = pneg %p377
      $region50: #{tpu_custom_call.1} parent=5 // pred_check_branch
        %380 = sbr.rel (%p378) target = $region52
      $region51: #{tpu_custom_call.1} parent=5 // pred_region
        %s381 = ssub.s32 %s19, 2
        // Predicated region
        $region53: #{tpu_custom_call.1} parent=51 // pred_check
          %p382 = pneg %p170
        $region54: #{tpu_custom_call.1} parent=51 // pred_check_branch
          %384 = sbr.rel (%p382) target = $region56
        $region55: #{tpu_custom_call.1} parent=51 // pred_region
          %s385 = sand.u32 %s155, 1
          %s386 = scalar_lea.sflag [#allocation4], %s385
          %s387 = sand.u32 %s155, 1
          %s388 = smul.addr %s387, 4
          %s389 = scalar_lea.vmem [#allocation7], %s388
          %391 = dma.done %s386, 64
        $region56: #{tpu_custom_call.1} parent=51 // pred_fallthru
          _
      $region52: #{tpu_custom_call.1} parent=5 // pred_fallthru
        _
    $region6: #{tpu_custom_call.1} parent=1 // loop_footer
      %s23 = sadd.s32 1, %s19
    $region7: #{tpu_custom_call.1} parent=1 // loop_footer_branch
      %18 = sbr.rel target = $region3
    $region8: #{tpu_custom_call.1} parent=1 // loop_exit
      _
    %392 = vsyncpa [#allocation3], 1
    %s393 = scalar_lea.sflag [#allocation3], 1
    %394 = vsyncpa %s393, 1
    %395 = vsyncpa [#allocation6], 1
    %s396 = scalar_lea.sflag [#allocation6], 1
    %397 = vsyncpa %s396, 1
    %398 = vsyncpa [#allocation4], 1
    %s399 = scalar_lea.sflag [#allocation4], 1
    %400 = vsyncpa %s399, 1

</llo_original>
